<compile_context>
chip_gen: v5e
topology: v5e:2x2
jax: 0.10.0
libtpu: 0.0.40
codegen_flags: <defaults>
</compile_context>

<pallas_src>
import math
import jax
import jax.numpy as jnp
from jax.experimental import pallas as pl
from jax.experimental.pallas import tpu as pltpu


def _conv1x1_sigmoid_kernel(x_ref, w_ref, b_ref, o_ref):
    # x_ref: (Bblk, Cin, T)   -- Bblk batch elements, one lane-dense HW tile
    # w_ref: (Cout, Cin)      -- resident (constant index map, single DMA)
    # b_ref: (Cout, 1)        -- resident, broadcast over lanes
    # o_ref: (Bblk, Cout, T)  -- lane-dense f32 output block
    bblk = x_ref.shape[0]
    w = w_ref[...]
    bias = b_ref[...]
    for b in range(bblk):  # static unroll; Bblk is small
        acc = jnp.dot(w, x_ref[b], preferred_element_type=jnp.float32)
        o_ref[b] = jax.nn.sigmoid(acc + bias)


def _pick_hw_tile(hw, cap):
    """Largest multiple of 128 that divides hw and is <= cap; 0 if none exists."""
    t = (min(cap, hw) // 128) * 128
    while t >= 128:
        if hw % t == 0:
            return t
        t -= 128
    return 0


def field_gnrt_unet_head_forward(features, weight, bias, *,
                                 tile_hw_cap=16384,
                                 vmem_block_budget=24 << 20):
    """features: NCHW [B, Cin, H, W]; weight: [Cout, Cin, 1, 1]; bias: [Cout].

    Returns (logits, {}) where logits is NCHW [B, Cout, H, W] float32,
    matching FieldGnrtUNetHead.forward in eval mode (is_drop=False).
    """
    B, Cin, H, W = features.shape
    Cout = weight.shape[0]
    HW = H * W

    # NCHW -> [B, Cin, HW] is a pure reshape (no transpose / extra HBM pass).
    x3d = features.reshape(B, Cin, HW)
    w2d = weight.reshape(Cout, Cin)
    b2d = bias.reshape(Cout, 1)

    itemsize = x3d.dtype.itemsize
    # Double-buffered input + output bytes per lane of tile; bound tile by VMEM budget.
    bytes_per_lane = 2 * (Cin * itemsize + Cout * 4)
    max_tile_vmem = max(128, int(vmem_block_budget) // bytes_per_lane)
    cap = max(128, min(tile_hw_cap, max_tile_vmem))

    padded = False
    if HW <= cap:
        tile = HW            # single HW tile: block dim == full array dim, always legal
    else:
        tile = _pick_hw_tile(HW, cap)
        if tile == 0:
            # Rare fallback: ragged HW with no 128-multiple divisor <= cap.
            # Costs one extra HBM pass (pad), but keeps correctness.
            tile = (cap // 128) * 128
            padded = True

    if padded:
        HWp = pl.cdiv(HW, tile) * tile
        x3d = jnp.pad(x3d, ((0, 0), (0, 0), (0, HWp - HW)))
    else:
        HWp = HW
    n_hw = HWp // tile

    # Batch-axis blocking when HW fits a single tile, to keep per-step DMA blocks big.
    bblk = 1
    if n_hw == 1 and B > 1:
        per_b_bytes = Cin * tile * itemsize
        target = 2 << 20
        bblk = max(1, min(B, target // max(per_b_bytes, 1)))
        # Clamp so double-buffered blocks stay within the VMEM budget.
        bblk = min(bblk, max(1, (int(vmem_block_budget) // bytes_per_lane) // max(tile, 1)))
        # Keep >= 2 grid steps when possible so both v7x TensorCores participate.
        if bblk >= B and B >= 2:
            bblk = B // 2
        bblk = max(1, bblk)
        while B % bblk:
            bblk -= 1

    in_block = bblk * Cin * tile * itemsize
    out_block = bblk * Cout * tile * 4
    vmem_limit = int(2 * (in_block + out_block) + Cout * Cin * 4 + (2 << 20))

    cost = pl.CostEstimate(
        flops=2 * B * Cout * Cin * HWp,
        transcendentals=B * Cout * HWp,
        bytes_accessed=B * Cin * HWp * itemsize + B * Cout * HWp * 4 + Cout * Cin * 4,
    )

    out3d = pl.pallas_call(
        _conv1x1_sigmoid_kernel,
        out_shape=jax.ShapeDtypeStruct((B, Cout, HWp), jnp.float32),
        grid_spec=pltpu.PrefetchScalarGridSpec(
            num_scalar_prefetch=0,
            grid=(B // bblk, n_hw),
            in_specs=[
                pl.BlockSpec((bblk, Cin, tile), lambda i, j: (i, 0, j)),
                pl.BlockSpec((Cout, Cin), lambda i, j: (0, 0)),
                pl.BlockSpec((Cout, 1), lambda i, j: (0, 0)),
            ],
            out_specs=pl.BlockSpec((bblk, Cout, tile), lambda i, j: (i, 0, j)),
        ),
        compiler_params=pltpu.CompilerParams(
            dimension_semantics=("parallel", "parallel"),
            vmem_limit_bytes=vmem_limit,
        ),
        cost_estimate=cost,
    )(x3d, w2d, b2d)

    # [B, Cout, HWp] -> strip padding (rare) -> NCHW (pure reshape, no transpose).
    if padded:
        out3d = out3d[:, :, :HW]
    logits = out3d.reshape(B, Cout, H, W)
    return logits, {}


if __name__ == "__main__":
    # Small shapes consistent with the module: in_channel=64, out_channel=2
    # (losses expect >=2 output channels), batch=2, spatial=16.
    B, Cin, Cout, H, W = 2, 64, 2, 16, 16

    key = jax.random.PRNGKey(0)
    kx, kw, kb = jax.random.split(key, 3)

    # Deterministic synthetic params (PyTorch Conv2d default-init-like bounds).
    fan_in = Cin * 1 * 1
    w_bound = math.sqrt(1.0 / fan_in)
    weight = jax.random.uniform(kw, (Cout, Cin, 1, 1), jnp.float32,
                                minval=-w_bound, maxval=w_bound)
    bias = jax.random.uniform(kb, (Cout,), jnp.float32,
                              minval=-w_bound, maxval=w_bound)

    features = jax.random.normal(kx, (B, Cin, H, W), jnp.float32)

    logits, losses = field_gnrt_unet_head_forward(features, weight, bias)
    logits = jax.block_until_ready(logits)

    # Reference check in plain JAX (1x1 conv + sigmoid).
    ref = jax.nn.sigmoid(
        jnp.einsum("bchw,oc->bohw", features, weight.reshape(Cout, Cin))
        + bias.reshape(1, Cout, 1, 1)
    ).astype(jnp.float32)

    assert logits.shape == (B, Cout, H, W)
    assert logits.dtype == jnp.float32
    assert losses == {}
    assert jnp.allclose(logits, ref, atol=1e-5, rtol=1e-5)

    # TODO(synk): training-mode losses() and input_ifft() (ifft2/ifftshift) are
    # not part of the eval forward pass and are left to host-side JAX.
    print("KERNEL_OK")
</pallas_src>

<mosaic_0001>
module attributes {stable_mosaic.version = 11 : i64} {
  func.func @_conv1x1_sigmoid_kernel(%arg0: i32, %arg1: i32, %arg2: memref<1x64x256xf32, #tpu.memory_space<vmem>>, %arg3: memref<2x64xf32, #tpu.memory_space<vmem>>, %arg4: memref<2x1xf32, #tpu.memory_space<vmem>>, %arg5: memref<1x2x256xf32, #tpu.memory_space<vmem>>) attributes {dimension_semantics = [#tpu.dimension_semantics<parallel>, #tpu.dimension_semantics<parallel>], iteration_bounds = array<i64: 2, 1>, scalar_prefetch = 0 : i64, scratch_operands = 0 : i64, tpu.core_type = #tpu.core_type<tc>, window_params = [{transform_indices = @transform_0, window_bounds = array<i64: 1, 64, 256>}, {pipeline_mode = #tpu.pipeline_mode<synchronous>, transform_indices = @transform_1, window_bounds = array<i64: 2, 64>}, {pipeline_mode = #tpu.pipeline_mode<synchronous>, transform_indices = @transform_2, window_bounds = array<i64: 2, 1>}, {transform_indices = @transform_3, window_bounds = array<i64: 1, 2, 256>}]} {
    %c0 = arith.constant 0 : index
    %c0_0 = arith.constant 0 : index
    %0 = vector.load %arg3[%c0, %c0_0] : memref<2x64xf32, #tpu.memory_space<vmem>>, vector<2x64xf32>
    %c0_1 = arith.constant 0 : index
    %c0_2 = arith.constant 0 : index
    %1 = vector.load %arg4[%c0_1, %c0_2] : memref<2x1xf32, #tpu.memory_space<vmem>>, vector<2x1xf32>
    %c0_3 = arith.constant 0 : index
    %c0_4 = arith.constant 0 : index
    %c0_5 = arith.constant 0 : index
    %2 = vector.load %arg2[%c0_3, %c0_4, %c0_5] : memref<1x64x256xf32, #tpu.memory_space<vmem>>, vector<1x64x256xf32>
    %3 = vector.shape_cast %2 : vector<1x64x256xf32> to vector<64x256xf32>
    %cst = arith.constant dense<0.000000e+00> : vector<2x256xf32>
    %4 = tpu.matmul %0, %3, %cst {dimension_numbers = #tpu.dot_dimension_numbers<[1], [0], [0], [1], [0, 0, 1, 1], [], []>} : vector<2x64xf32>, vector<64x256xf32>, vector<2x256xf32> -> vector<2x256xf32>
    %5 = vector.broadcast %1 : vector<2x1xf32> to vector<2x256xf32>
    %6 = arith.addf %4, %5 : vector<2x256xf32>
    %7 = arith.negf %6 : vector<2x256xf32>
    %8 = math.exp %7 : vector<2x256xf32>
    %cst_6 = arith.constant 1.000000e+00 : f32
    %9 = vector.broadcast %cst_6 : f32 to vector<2x256xf32>
    %10 = arith.addf %9, %8 : vector<2x256xf32>
    %11 = arith.divf %9, %10 : vector<2x256xf32>
    %c0_7 = arith.constant 0 : index
    %c0_8 = arith.constant 0 : index
    %c0_9 = arith.constant 0 : index
    %12 = vector.load %arg5[%c0_7, %c0_8, %c0_9] : memref<1x2x256xf32, #tpu.memory_space<vmem>>, vector<1x2x256xf32>
    %13 = vector.shape_cast %12 : vector<1x2x256xf32> to vector<2x256xf32>
    %14 = vector.shape_cast %11 : vector<2x256xf32> to vector<1x2x256xf32>
    tpu.vector_store %arg5[%c0_7, %c0_8, %c0_9], %14 {strides = array<i32>} : memref<1x2x256xf32, #tpu.memory_space<vmem>>, vector<1x2x256xf32>,
    return
  }
  func.func @transform_0(%arg0: i32, %arg1: i32) -> (i32, i32, i32) {
    %c0_i32 = arith.constant 0 : i32
    %c0_i32_0 = arith.constant 0 : i32
    return %arg0, %c0_i32, %arg1 : i32, i32, i32
  }
  func.func @transform_1(%arg0: i32, %arg1: i32) -> (i32, i32) {
    %c0_i32 = arith.constant 0 : i32
    %c0_i32_0 = arith.constant 0 : i32
    %c0_i32_1 = arith.constant 0 : i32
    return %c0_i32, %c0_i32_0 : i32, i32
  }
  func.func @transform_2(%arg0: i32, %arg1: i32) -> (i32, i32) {
    %c0_i32 = arith.constant 0 : i32
    %c0_i32_0 = arith.constant 0 : i32
    %c0_i32_1 = arith.constant 0 : i32
    return %c0_i32, %c0_i32_0 : i32, i32
  }
  func.func @transform_3(%arg0: i32, %arg1: i32) -> (i32, i32, i32) {
    %c0_i32 = arith.constant 0 : i32
    %c0_i32_0 = arith.constant 0 : i32
    return %arg0, %c0_i32, %arg1 : i32, i32, i32
  }
}

</mosaic_0001>

<llo_original>
// kernel: tpu_custom_call.1
$region0: #{tpu_custom_call.1}
  #allocation0 [shape = 'u32[]', space=smem, size = 0x4, offset = 0x4, fixed_abs, tag = 'smem constant byte address 0x4 - core index']
  #allocation1 [shape = 'u32[72,128]{1,0:T(1,128)}', space=vmem, size = 0x9000, scoped, tag = 'internal scratch']
  %s0 = inlined_call_operand.hbm [shape: f32[2,64,256], index: 0, kind: input, shape index: {}]
  %s1 = inlined_call_operand.vmem [shape: f32[2,64], index: 1, kind: input, shape index: {}]
  %s2 = inlined_call_operand.vmem [shape: f32[2,1], index: 2, kind: input, shape index: {}]
  %s3 = inlined_call_operand.hbm [shape: f32[2,2,256], index: 3, kind: output, shape index: {}]
  %s4 = sld [smem:[#allocation0]]
  $region49: #{tpu_custom_call.1} parent=0
    _
  %s6 = ssub.s32 1, %s4
  %s7 = scalar_select 0, %s6, %s4
  $region1: #{tpu_custom_call.1} parent=0
    #allocation2 [shape = 'u8[131072]{0}', space=vmem, size = 0x20000, scoped, tag = 'input window, operand 0']
    #allocation3 [shape = 's32[2]{0}', space=sflag, size = 0x8, scoped, tag = 'scoped memory for tpu_custom_call.1']
    #allocation4 [shape = 's32[2]{0}', space=sflag, size = 0x8, scoped, tag = 'scoped memory for tpu_custom_call.1']
    #allocation5 [shape = 'u8[4096]{0}', space=vmem, size = 0x1000, scoped, tag = 'output window, operand 0']
    %8 = vsyncpa [#allocation3], 0
    %s9 = scalar_lea.sflag [#allocation3], 1
    %10 = vsyncpa %s9, 0
    %11 = vsyncpa [#allocation4], 0
    %s12 = scalar_lea.sflag [#allocation4], 1
    %13 = vsyncpa %s12, 0
    loop: start=0, step=1, limit=4
    $region2: #{tpu_custom_call.1} parent=1 // loop_pre_header
      _
    $region3: #{tpu_custom_call.1} parent=1 // loop_header
      %s15 = sphi 0, %s19
      %p16 = scmp.ge.s32.totalorder %s15, 4
      %s22 = sphi 0, %s34
      %s23 = sphi 0, %s30
      %s24 = sphi 0, %s22
      %s25 = sphi 0, %s23
      %s26 = sphi 0, %s24
      %s27 = sphi 0, %s25
      %s39 = sphi 0, %s41
      %s42 = sphi 0, %s39
      %s43 = sphi 0, %s42
      %s59 = sphi 0, %s43
      %s63 = sphi 0, %s63
      %s65 = sphi 0, %s63
      %s66 = sphi 0, %s65
      %s80 = sphi 0, %s66
      %s84 = sphi 0, %s84
      %s86 = sphi 0, %s84
      %s87 = sphi 0, %s86
      %s101 = sphi 0, %s87
      %s109 = sphi 0, %s111
      %s112 = sphi 0, %s109
      %s113 = sphi 0, %s112
      %s129 = sphi 0, %s113
    $region4: #{tpu_custom_call.1} parent=1 // loop_header_branch
      %18 = sbr.rel (%p16) target = $region8
    $region5: #{tpu_custom_call.1} parent=1 // loop_body
      %s20 = ssub.s32 %s15, 1
      %s21 = ssub.s32 %s15, 2
      %s28 = sadd.s32 1, %s23
      %p29 = scmp.ge.s32.totalorder %s28, 1
      %s30 = scalar_select %p29, 0, %s28
      %s31 = sadd.s32 1, %s22
      %s32 = scalar_select %p29, %s31, %s22
      %p33 = scmp.ge.s32.totalorder %s32, 2
      %s34 = scalar_select %p33, 0, %s32
      %s35 = ssub.s32 %s22, %s34
      %s36 = ssub.s32 %s23, %s30
      %s37 = sor.u32 %s35, %s36
      %p38 = scmp.eq.s32.totalorder %s37, 0
      %s40 = sadd.s32 %s39, 1
      %s41 = scalar_select %p38, %s39, %s40
      %p44 = pneg %p38
      %p45 = scmp.eq.s32.totalorder %s15, 1
      %p46 = por %p44, %p45
      %p47 = scmp.ne.s32.totalorder %s39, %s42
      %p48 = scmp.eq.s32.totalorder %s15, 0
      %p49 = por %p47, %p48
      %p50 = scmp.ne.s32.totalorder %s39, %s42
      %p51 = scmp.eq.s32.totalorder %s20, 1
      %p52 = por %p50, %p51
      %p53 = scmp.ne.s32.totalorder %s42, %s43
      %p54 = scmp.eq.s32.totalorder %s20, 0
      %p55 = por %p53, %p54
      %p56 = scmp.ne.s32.totalorder %s42, %s43
      %p57 = scmp.eq.s32.totalorder %s21, 1
      %p58 = por %p56, %p57
      %p60 = scmp.ne.s32.totalorder %s43, %s59
      %p61 = scmp.eq.s32.totalorder %s21, 0
      %p62 = por %p60, %p61
      %s64 = sadd.s32 %s63, 1
      %p67 = scmp.eq.s32.totalorder %s15, 1
      %p68 = scmp.ne.s32.totalorder %s63, %s65
      %p69 = scmp.eq.s32.totalorder %s15, 0
      %p70 = por %p68, %p69
      %p71 = scmp.ne.s32.totalorder %s63, %s65
      %p72 = scmp.eq.s32.totalorder %s20, 1
      %p73 = por %p71, %p72
      %p74 = scmp.ne.s32.totalorder %s65, %s66
      %p75 = scmp.eq.s32.totalorder %s20, 0
      %p76 = por %p74, %p75
      %p77 = scmp.ne.s32.totalorder %s65, %s66
      %p78 = scmp.eq.s32.totalorder %s21, 1
      %p79 = por %p77, %p78
      %p81 = scmp.ne.s32.totalorder %s66, %s80
      %p82 = scmp.eq.s32.totalorder %s21, 0
      %p83 = por %p81, %p82
      %s85 = sadd.s32 %s84, 1
      %p88 = scmp.eq.s32.totalorder %s15, 1
      %p89 = scmp.ne.s32.totalorder %s84, %s86
      %p90 = scmp.eq.s32.totalorder %s15, 0
      %p91 = por %p89, %p90
      %p92 = scmp.ne.s32.totalorder %s84, %s86
      %p93 = scmp.eq.s32.totalorder %s20, 1
      %p94 = por %p92, %p93
      %p95 = scmp.ne.s32.totalorder %s86, %s87
      %p96 = scmp.eq.s32.totalorder %s20, 0
      %p97 = por %p95, %p96
      %p98 = scmp.ne.s32.totalorder %s86, %s87
      %p99 = scmp.eq.s32.totalorder %s21, 1
      %p100 = por %p98, %p99
      %p102 = scmp.ne.s32.totalorder %s87, %s101
      %p103 = scmp.eq.s32.totalorder %s21, 0
      %p104 = por %p102, %p103
      %s105 = ssub.s32 %s22, %s34
      %s106 = ssub.s32 %s23, %s30
      %s107 = sor.u32 %s105, %s106
      %p108 = scmp.eq.s32.totalorder %s107, 0
      %s110 = sadd.s32 %s109, 1
      %s111 = scalar_select %p108, %s109, %s110
      %p114 = pneg %p108
      %p115 = scmp.eq.s32.totalorder %s15, 1
      %p116 = por %p114, %p115
      %p117 = scmp.ne.s32.totalorder %s109, %s112
      %p118 = scmp.eq.s32.totalorder %s15, 0
      %p119 = por %p117, %p118
      %p120 = scmp.ne.s32.totalorder %s109, %s112
      %p121 = scmp.eq.s32.totalorder %s20, 1
      %p122 = por %p120, %p121
      %p123 = scmp.ne.s32.totalorder %s112, %s113
      %p124 = scmp.eq.s32.totalorder %s20, 0
      %p125 = por %p123, %p124
      %p126 = scmp.ne.s32.totalorder %s112, %s113
      %p127 = scmp.eq.s32.totalorder %s21, 1
      %p128 = por %p126, %p127
      %p130 = scmp.ne.s32.totalorder %s113, %s129
      %p131 = scmp.eq.s32.totalorder %s21, 0
      %p132 = por %p130, %p131
      %p133 = scmp.le.s32.totalorder 1, %s15
      %p134 = scmp.lt.s32.totalorder %s15, 3
      %p135 = pnand %p133, %p134
      %p136 = pneg %p135
      // Predicated region
      $region9: #{tpu_custom_call.1} parent=5 // pred_check
        _
      $region10: #{tpu_custom_call.1} parent=5 // pred_check_branch
        %138 = sbr.rel (%p135) target = $region12
      $region11: #{tpu_custom_call.1} parent=5 // pred_region
        %s139 = ssub.s32 %s15, 1
        // Predicated region
        $region13: #{tpu_custom_call.1} parent=11 // pred_check
          %p140 = pneg %p76
        $region14: #{tpu_custom_call.1} parent=11 // pred_check_branch
          %142 = sbr.rel (%p140) target = $region16
        $region15: #{tpu_custom_call.1} parent=11 // pred_region
          _
        $region16: #{tpu_custom_call.1} parent=11 // pred_fallthru
          _
        // Predicated region
        $region17: #{tpu_custom_call.1} parent=11 // pred_check
          %p143 = pneg %p97
        $region18: #{tpu_custom_call.1} parent=11 // pred_check_branch
          %145 = sbr.rel (%p143) target = $region20
        $region19: #{tpu_custom_call.1} parent=11 // pred_region
          _
        $region20: #{tpu_custom_call.1} parent=11 // pred_fallthru
          _
      $region12: #{tpu_custom_call.1} parent=5 // pred_fallthru
        _
      %p146 = scmp.lt.s32.totalorder %s15, 2
      // Predicated region
      $region21: #{tpu_custom_call.1} parent=5 // pred_check
        %p147 = pneg %p146
      $region22: #{tpu_custom_call.1} parent=5 // pred_check_branch
        %149 = sbr.rel (%p147) target = $region24
      $region23: #{tpu_custom_call.1} parent=5 // pred_region
        // Predicated region
        $region25: #{tpu_custom_call.1} parent=23 // pred_check
          %p150 = pneg %p49
        $region26: #{tpu_custom_call.1} parent=23 // pred_check_branch
          %152 = sbr.rel (%p150) target = $region28
        $region27: #{tpu_custom_call.1} parent=23 // pred_region
          %s153 = sand.u32 %s39, 1
          %s154 = scalar_lea.sflag [#allocation3], %s153
          %s155 = sand.u32 %s39, 1
          %s156 = smul.addr %s155, 128
          %s157 = scalar_lea.vmem [#allocation2], %s156
          %s158 = smul.u32 2, %s23
          %160 = vsyncadd %s154, 0
          %s161 = smul.addr %s22, 16
          %s162 = sadd.s32 %s158, %s161
          %s163 = smul.addr %s162, 8
          %s164 = scalar_lea.hbm %s0, %s163
          %s165 = sshll.u32 %s164, 4
          %s166 = int_to_ptr.hbm [resolvable:$true] %s165
          %s167 = sshll.u32 %s157, 4
          %s168 = int_to_ptr.vmem [resolvable:$true] %s167
          %173 = dma.hbm_to_vmem [thread:$0]  %s166, 2048, %s168, %s154, 256, 256, 16
        $region28: #{tpu_custom_call.1} parent=23 // pred_fallthru
          _
      $region24: #{tpu_custom_call.1} parent=5 // pred_fallthru
        _
      %p174 = scmp.le.s32.totalorder 1, %s15
      %p175 = scmp.lt.s32.totalorder %s15, 3
      %p176 = pnand %p174, %p175
      %p177 = pneg %p176
      // Predicated region
      $region29: #{tpu_custom_call.1} parent=5 // pred_check
        _
      $region30: #{tpu_custom_call.1} parent=5 // pred_check_branch
        %179 = sbr.rel (%p176) target = $region32
      $region31: #{tpu_custom_call.1} parent=5 // pred_region
        %s180 = ssub.s32 %s15, 1
        %s181 = sand.u32 %s42, 1
        %s182 = scalar_lea.sflag [#allocation3], %s181
        %s183 = sand.u32 %s42, 1
        %s184 = smul.addr %s183, 128
        %s185 = scalar_lea.vmem [#allocation2], %s184
        // Predicated region
        $region33: #{tpu_custom_call.1} parent=31 // pred_check
          %p186 = pneg %p55
        $region34: #{tpu_custom_call.1} parent=31 // pred_check_branch
          %188 = sbr.rel (%p186) target = $region36
        $region35: #{tpu_custom_call.1} parent=31 // pred_region
          %190 = dma.done %s182, 2048
        $region36: #{tpu_custom_call.1} parent=31 // pred_fallthru
          _
        %s191 = sand.u32 %s42, 1
        %s192 = scalar_lea.sflag [#allocation3], %s191
        %s193 = sand.u32 %s42, 1
        %s194 = smul.addr %s193, 128
        %s195 = scalar_lea.vmem [#allocation2], %s194
        %p196 = pneg %p55
        %p197 = pneg %p52
        %p198 = pneg %p76
        %p199 = pneg %p73
        %p200 = pneg %p97
        %p201 = pneg %p94
        %p202 = pneg %p125
        %p203 = pneg %p122
        %s204 = sand.u32 %s112, 1
        %s205 = scalar_lea.sflag [#allocation4], %s204
        %s206 = sand.u32 %s112, 1
        %s207 = smul.addr %s206, 4
        %s208 = scalar_lea.vmem [#allocation5], %s207
        %s209 = smul.u32 2, %s25
        %s210 = smul.u32 2, %s25
        %v211 = vld [vmem:[%s1] sm:$0x3]
        %v212 = vld [vmem:[%s2] sm:$0x3]
        %v213 = vld [vmem:[%s185] sm:$0xff]
        %v214 = vld [vmem:[%s185 + $0x8] sm:$0xff]
        %v215 = vld [vmem:[%s185 + $0x10] sm:$0xff]
        %v216 = vld [vmem:[%s185 + $0x18] sm:$0xff]
        %v217 = vld [vmem:[%s185 + $0x20] sm:$0xff]
        %v218 = vld [vmem:[%s185 + $0x28] sm:$0xff]
        %v219 = vld [vmem:[%s185 + $0x30] sm:$0xff]
        %v220 = vld [vmem:[%s185 + $0x38] sm:$0xff]
        %v221 = vld [vmem:[%s185 + $0x40] sm:$0xff]
        %v222 = vld [vmem:[%s185 + $0x48] sm:$0xff]
        %v223 = vld [vmem:[%s185 + $0x50] sm:$0xff]
        %v224 = vld [vmem:[%s185 + $0x58] sm:$0xff]
        %v225 = vld [vmem:[%s185 + $0x60] sm:$0xff]
        %v226 = vld [vmem:[%s185 + $0x68] sm:$0xff]
        %v227 = vld [vmem:[%s185 + $0x70] sm:$0xff]
        %v228 = vld [vmem:[%s185 + $0x78] sm:$0xff]
        %230 = vset.pattern.permute.xlu0 0
        %231 = vperm.xlu0 %230, %v212
        %v232 = vpop.permute.xlu0 %231
        %vm234 = vcmask 523264
        %v236 = vsel %vm234, %v211, 0
        %238 = vmatpush.msra.mxu0 0.0
        %239 = vmatpush.msra.mxu0 0.0
        %240 = vmatpush.msra.mxu0 0.0
        %241 = vmatpush.msra.mxu0 0.0
        %242 = vmatpush.msra.mxu0 0.0
        %243 = vmatpush.msra.mxu0 0.0
        %244 = vmatpush.msra.mxu0 0.0
        %245 = vmatpush.msra.mxu0 0.0
        %246 = vmatpush.msra.mxu0 %v227
        %247 = vmatpush.msra.mxu0 %v225
        %248 = vmatpush.msra.mxu0 %v223
        %249 = vmatpush.msra.mxu0 %v221
        %250 = vmatpush.msra.mxu0 %v219
        %251 = vmatpush.msra.mxu0 %v217
        %252 = vmatpush.msra.mxu0 %v215
        %253 = vmatpush.msra.mxu0 %v213
        %254 = vmatmul.f32.gmra.mxu0 %v236
        %v255 = vpop.f32.mrf.mxu0
        %v256 = vadd.f32 %v232, %v255
        %257 = vdwg.mxu0
        %258 = vmatpush.msra.mxu0 0.0
        %259 = vmatpush.msra.mxu0 0.0
        %260 = vmatpush.msra.mxu0 0.0
        %261 = vmatpush.msra.mxu0 0.0
        %262 = vmatpush.msra.mxu0 0.0
        %263 = vmatpush.msra.mxu0 0.0
        %264 = vmatpush.msra.mxu0 0.0
        %265 = vmatpush.msra.mxu0 0.0
        %266 = vmatpush.msra.mxu0 %v228
        %267 = vmatpush.msra.mxu0 %v226
        %268 = vmatpush.msra.mxu0 %v224
        %269 = vmatpush.msra.mxu0 %v222
        %270 = vmatpush.msra.mxu0 %v220
        %271 = vmatpush.msra.mxu0 %v218
        %272 = vmatpush.msra.mxu0 %v216
        %273 = vmatpush.msra.mxu0 %v214
        %274 = vmatmul.f32.gmra.mxu0 %v236
        %v275 = vpop.f32.mrf.mxu0
        %v276 = vadd.f32 %v232, %v275
        %277 = vdwg.mxu0
        %v278 = vxor.u32 %v256, 2147483648
        %v279 = vxor.u32 %v276, 2147483648
        %v280 = vmul.f32 %v278, 1.442695
        %v281 = vpow.pop %v280
        %v282 = vmul.f32 %v279, 1.442695
        %v283 = vpow.pop %v282
        %v284 = vadd.f32 %v281, 1.0
        %v285 = vadd.f32 %v283, 1.0
        %v286 = vrcp.pop %v284
        %v287 = vmul.f32 %v284, %v286
        %v288 = vsub.f32 1.0, %v287
        %v289 = vmul.f32 %v286, %v288
        %v290 = vadd.f32 %v286, %v289
        %vm291 = vweird.f32 %v284
        %vm292 = vweird.f32 %v286
        %vm293 = vmor %vm291, %vm292
        %v294 = vsel %vm293, %v286, %v290
        %v295 = vand.u32 2147483647, %v284
        %vm296 = vcmp.eq.f32.partialorder %v295, 8.507059e+37
        %v297 = vand.u32 %v284, 2147483648
        %v298 = vor.u32 1.1754944e-38, %v297
        %v299 = vsel %vm296, %v298, %v294
        %v300 = vmul.f32 1.0, %v299
        %v301 = vrcp.pop %v285
        %v302 = vmul.f32 %v285, %v301
        %v303 = vsub.f32 1.0, %v302
        %v304 = vmul.f32 %v301, %v303
        %v305 = vadd.f32 %v301, %v304
        %vm306 = vweird.f32 %v285
        %vm307 = vweird.f32 %v301
        %vm308 = vmor %vm306, %vm307
        %v309 = vsel %vm308, %v301, %v305
        %v310 = vand.u32 2147483647, %v285
        %vm311 = vcmp.eq.f32.partialorder %v310, 8.507059e+37
        %v312 = vand.u32 %v285, 2147483648
        %v313 = vor.u32 1.1754944e-38, %v312
        %v314 = vsel %vm311, %v313, %v309
        %v315 = vmul.f32 1.0, %v314
        %v318 = vrot.slane %v315, 6
        %vm319 = vcmask 1041408
        %v320 = vsel %vm319, %v300, %v318
        %322 = vst [vmem:[%s208] sm:$0xf] %v320
        %s323 = sand.u32 %s112, 1
        %s324 = scalar_lea.sflag [#allocation4], %s323
        %s325 = sand.u32 %s112, 1
        %s326 = smul.addr %s325, 4
        %s327 = scalar_lea.vmem [#allocation5], %s326
        // Predicated region
        $region37: #{tpu_custom_call.1} parent=31 // pred_check
          %p328 = pneg %p122
        $region38: #{tpu_custom_call.1} parent=31 // pred_check_branch
          %330 = sbr.rel (%p328) target = $region40
        $region39: #{tpu_custom_call.1} parent=31 // pred_region
          %s331 = smul.u32 2, %s25
          %333 = vsyncadd %s324, 0
          %s334 = smul.addr %s24, 2
          %s335 = sadd.s32 %s331, %s334
          %s336 = smul.addr %s335, 2
          %s337 = scalar_lea.hbm %s3, %s336
          %s339 = sshll.u32 %s327, 4
          %s340 = int_to_ptr.vmem [resolvable:$true] %s339
          %s341 = sshll.u32 %s337, 4
          %s342 = int_to_ptr.hbm [resolvable:$true] %s341
          %344 = dma.vmem_to_hbm [thread:$0]  %s340, 64, %s342, %s324
        $region40: #{tpu_custom_call.1} parent=31 // pred_fallthru
          _
      $region32: #{tpu_custom_call.1} parent=5 // pred_fallthru
        _
      %p345 = scmp.le.s32.totalorder 2, %s15
      // Predicated region
      $region41: #{tpu_custom_call.1} parent=5 // pred_check
        %p346 = pneg %p345
      $region42: #{tpu_custom_call.1} parent=5 // pred_check_branch
        %348 = sbr.rel (%p346) target = $region44
      $region43: #{tpu_custom_call.1} parent=5 // pred_region
        %s349 = ssub.s32 %s15, 2
        // Predicated region
        $region45: #{tpu_custom_call.1} parent=43 // pred_check
          %p350 = pneg %p128
        $region46: #{tpu_custom_call.1} parent=43 // pred_check_branch
          %352 = sbr.rel (%p350) target = $region48
        $region47: #{tpu_custom_call.1} parent=43 // pred_region
          %s353 = sand.u32 %s113, 1
          %s354 = scalar_lea.sflag [#allocation4], %s353
          %s355 = sand.u32 %s113, 1
          %s356 = smul.addr %s355, 4
          %s357 = scalar_lea.vmem [#allocation5], %s356
          %359 = dma.done %s354, 64
        $region48: #{tpu_custom_call.1} parent=43 // pred_fallthru
          _
      $region44: #{tpu_custom_call.1} parent=5 // pred_fallthru
        _
    $region6: #{tpu_custom_call.1} parent=1 // loop_footer
      %s19 = sadd.s32 1, %s15
    $region7: #{tpu_custom_call.1} parent=1 // loop_footer_branch
      %14 = sbr.rel target = $region3
    $region8: #{tpu_custom_call.1} parent=1 // loop_exit
      _
    %360 = vsyncpa [#allocation3], 1
    %s361 = scalar_lea.sflag [#allocation3], 1
    %362 = vsyncpa %s361, 1
    %363 = vsyncpa [#allocation4], 1
    %s364 = scalar_lea.sflag [#allocation4], 1
    %365 = vsyncpa %s364, 1

</llo_original>
